<compile_context>
chip_gen: v7x
topology: tpu7x:2x2x1
jax: 0.10.0
libtpu: 0.0.40
codegen_flags: <defaults>
</compile_context>

<pallas_src>
import jax
import jax.numpy as jnp
from jax.experimental import pallas as pl
from jax.experimental.pallas import tpu as pltpu

_LANES = 128
# ~4 MiB per block: DMA time per block >> per-step overhead on every
# generation, while double-buffered in+out stays at ~16 MiB of VMEM.
_MAX_BLOCK_BYTES = 4 * 1024 * 1024
# 16 MiB of pipelined buffers exceeds v5e's 16 MiB scoped-VMEM default, so
# raise the limit explicitly; 32 MiB fits physical VMEM on v5e/v6e/v7x.
_VMEM_LIMIT_BYTES = 32 * 1024 * 1024


def _elementwise_kernel(x_ref, o_ref):
    x = x_ref[...]
    # (2x + x + x^2 + x^3) / 3  ==  x + x*x*(1+x) * (1/3)    (f(0) == 0)
    o_ref[...] = x + (x * x) * (x + 1.0) * (1.0 / 3.0)


def _round_up(a, b):
    return -(-a // b) * b


def _sublane_multiple(dtype):
    # Min tile is (8,128) for 4B dtypes, (16,128) for 2B, (32,128) for 1B.
    return max(8, 32 // jnp.dtype(dtype).itemsize)


def pt_module_forward(x, *, donate_input=False):
    """Elementwise forward matching PtModule. x: any shape, float dtype."""
    orig_shape = x.shape
    dtype = x.dtype
    n = x.size
    itemsize = jnp.dtype(dtype).itemsize

    sublane = _sublane_multiple(dtype)
    max_block_rows = max(sublane, _MAX_BLOCK_BYTES // (_LANES * itemsize))
    max_block_rows = (max_block_rows // sublane) * sublane

    aligned = (n % _LANES) == 0
    if aligned:
        # Pure reshape: no pad, no extra HBM passes, even if rows is not a
        # multiple of block_rows (Pallas masks the partial last block, and
        # f(garbage) in dropped sublanes is harmless).
        rows = n // _LANES
        x2d = x.reshape(rows, _LANES)
    else:
        # TODO(synk): for truly ragged n, mask the tail store in-kernel
        # (scalar-prefetch n + pltpu.store(mask=...)) to drop this pad/slice.
        rows = -(-n // _LANES)
        padded = rows * _LANES
        x2d = jnp.pad(jnp.ravel(x), (0, padded - n)).reshape(rows, _LANES)

    block_rows = min(max_block_rows, _round_up(rows, sublane))
    grid = (pl.cdiv(rows, block_rows),)

    # Only alias when the caller actually donates x; otherwise XLA would
    # insert a defensive copy (an extra HBM pass) to make the alias legal.
    aliases = {0: 0} if donate_input else {}

    out2d = pl.pallas_call(
        _elementwise_kernel,
        out_shape=jax.ShapeDtypeStruct((rows, _LANES), dtype),
        grid_spec=pltpu.PrefetchScalarGridSpec(
            num_scalar_prefetch=0,
            grid=grid,
            in_specs=[pl.BlockSpec((block_rows, _LANES), lambda i: (i, 0))],
            out_specs=pl.BlockSpec((block_rows, _LANES), lambda i: (i, 0)),
        ),
        compiler_params=pltpu.CompilerParams(
            dimension_semantics=("parallel",),
            vmem_limit_bytes=_VMEM_LIMIT_BYTES,
        ),
        cost_estimate=pl.CostEstimate(
            flops=5 * n,
            transcendentals=0,
            bytes_accessed=2 * n * itemsize,
        ),
        input_output_aliases=aliases,
    )(x2d)

    if aligned:
        return out2d.reshape(orig_shape)
    return out2d.reshape(-1)[:n].reshape(orig_shape)


def _reference(x):
    out = x * 2
    for i in range(3):
        out = out + x ** (i + 1)
    return out / 3


if __name__ == "__main__":
    key = jax.random.PRNGKey(0)
    x = jax.random.normal(key, (2, 4, 16, 16), dtype=jnp.float32)  # NCHW

    y = pt_module_forward(x)
    jax.block_until_ready(y)

    y_ref = _reference(x)
    assert y.shape == x.shape and y.dtype == x.dtype
    assert jnp.allclose(y, y_ref, atol=1e-5, rtol=1e-5)

    print("KERNEL_OK")
</pallas_src>

<mosaic_0001>
module attributes {stable_mosaic.version = 11 : i64} {
  func.func @_elementwise_kernel(%arg0: i32, %arg1: memref<16x128xf32, #tpu.memory_space<vmem>>, %arg2: memref<16x128xf32, #tpu.memory_space<vmem>>) attributes {dimension_semantics = [#tpu.dimension_semantics<parallel>], iteration_bounds = array<i64: 1>, scalar_prefetch = 0 : i64, scratch_operands = 0 : i64, tpu.core_type = #tpu.core_type<tc>, window_params = [{transform_indices = @transform_0, window_bounds = array<i64: 16, 128>}, {transform_indices = @transform_1, window_bounds = array<i64: 16, 128>}]} {
    %c0 = arith.constant 0 : index
    %c0_0 = arith.constant 0 : index
    %0 = vector.load %arg1[%c0, %c0_0] : memref<16x128xf32, #tpu.memory_space<vmem>>, vector<16x128xf32>
    %1 = arith.mulf %0, %0 : vector<16x128xf32>
    %cst = arith.constant 1.000000e+00 : f32
    %2 = vector.broadcast %cst : f32 to vector<16x128xf32>
    %3 = arith.addf %0, %2 : vector<16x128xf32>
    %4 = arith.mulf %1, %3 : vector<16x128xf32>
    %cst_1 = arith.constant 0.333333343 : f32
    %5 = vector.broadcast %cst_1 : f32 to vector<16x128xf32>
    %6 = arith.mulf %4, %5 : vector<16x128xf32>
    %7 = arith.addf %0, %6 : vector<16x128xf32>
    %c0_2 = arith.constant 0 : index
    %c0_3 = arith.constant 0 : index
    %8 = vector.load %arg2[%c0_2, %c0_3] : memref<16x128xf32, #tpu.memory_space<vmem>>, vector<16x128xf32>
    tpu.vector_store %arg2[%c0_2, %c0_3], %7 {strides = array<i32>} : memref<16x128xf32, #tpu.memory_space<vmem>>, vector<16x128xf32>,
    return
  }
  func.func @transform_0(%arg0: i32) -> (i32, i32) {
    %c0_i32 = arith.constant 0 : i32
    %c0_i32_0 = arith.constant 0 : i32
    return %arg0, %c0_i32 : i32, i32
  }
  func.func @transform_1(%arg0: i32) -> (i32, i32) {
    %c0_i32 = arith.constant 0 : i32
    %c0_i32_0 = arith.constant 0 : i32
    return %arg0, %c0_i32 : i32, i32
  }
}

</mosaic_0001>

<llo_original>
// kernel: tpu_custom_call.1
$region0: #{tpu_custom_call.1}
  #allocation0 [shape = 'u32[]', space=smem, size = 0x4, offset = 0x4, fixed_abs, tag = 'smem constant byte address 0x4 - core index']
  #allocation1 [shape = 'u32[144,128]{1,0:T(1,128)}', space=vmem, size = 0x12000, scoped, tag = 'internal scratch']
  %s0 = inlined_call_operand.hbm [shape: f32[16,128], index: 0, kind: input, shape index: {}]
  %s1 = inlined_call_operand.hbm [shape: f32[16,128], index: 1, kind: output, shape index: {}]
  %s2 = sld [smem:[#allocation0]]
  $region18: #{tpu_custom_call.1} parent=0
    _
  %s4 = ssub.s32 1, %s2
  %s5 = scalar_select 0, %s4, %s2
  $region1: #{tpu_custom_call.1} parent=0
    #allocation2 [shape = 'u8[8192]{0}', space=vmem, size = 0x2000, scoped, tag = 'input window, operand 0, single buffered']
    #allocation3 [shape = 's32[1]{0}', space=sflag, size = 0x4, scoped, tag = 'scoped memory for tpu_custom_call.1']
    #allocation4 [shape = 's32[1]{0}', space=sflag, size = 0x4, scoped, tag = 'scoped memory for tpu_custom_call.1']
    #allocation5 [shape = 'u8[8192]{0}', space=vmem, size = 0x2000, scoped, tag = 'output window, operand 0, single buffered']
    %6 = vsyncpa [#allocation3], 0
    %7 = vsyncpa [#allocation4], 0
    // Predicated region
    $region2: #{tpu_custom_call.1} parent=1 // pred_check
      _
    $region3: #{tpu_custom_call.1} parent=1 // pred_check_branch
      %9 = sbr.rel (0) target = $region5
    $region4: #{tpu_custom_call.1} parent=1 // pred_region
      %s11 = ssub.s32 256, 256
      %12 = vsyncadd [#allocation3], %s11
      %s13 = sshll.u32 [#allocation2], 4
      %s14 = int_to_ptr.vmem [resolvable:$true] %s13
      %19 = dma.hbm_to_vmem [thread:$0]  %s0, 256, %s14, [#allocation3], 128, 128, 8
    $region5: #{tpu_custom_call.1} parent=1 // pred_fallthru
      _
    // Predicated region
    $region6: #{tpu_custom_call.1} parent=1 // pred_check
      _
    $region7: #{tpu_custom_call.1} parent=1 // pred_check_branch
      %21 = sbr.rel (0) target = $region9
    $region8: #{tpu_custom_call.1} parent=1 // pred_region
      %22 = dma.done [#allocation3], 256
    $region9: #{tpu_custom_call.1} parent=1 // pred_fallthru
      _
    %v23 = vld [vmem:[#allocation2] sm:$0xff]
    %v24 = vld [vmem:[#allocation2 + $0x8] sm:$0xff]
    %v25 = vmul.f32 %v23, %v23
    %v26 = vmul.f32 %v24, %v24
    %v27 = vadd.f32 %v23, 1.0
    %v28 = vadd.f32 %v24, 1.0
    %v29 = vmul.f32 %v25, %v27
    %v30 = vmul.f32 %v26, %v28
    %v31 = vmul.f32 %v29, 0.33333334
    %v32 = vmul.f32 %v30, 0.33333334
    %v33 = vadd.f32 %v23, %v31
    %v34 = vadd.f32 %v24, %v32
    %35 = vst [vmem:[#allocation5] sm:$0xff] %v33
    %36 = vst [vmem:[#allocation5 + $0x8] sm:$0xff] %v34
    // Predicated region
    $region10: #{tpu_custom_call.1} parent=1 // pred_check
      _
    $region11: #{tpu_custom_call.1} parent=1 // pred_check_branch
      %38 = sbr.rel (0) target = $region13
    $region12: #{tpu_custom_call.1} parent=1 // pred_region
      %s40 = ssub.s32 256, 256
      %41 = vsyncadd [#allocation4], %s40
      %s42 = sshll.u32 [#allocation5], 4
      %s43 = int_to_ptr.vmem [resolvable:$true] %s42
      %48 = dma.vmem_to_hbm [thread:$0]  %s43, 256, %s1, [#allocation4], 128, 128, 8
    $region13: #{tpu_custom_call.1} parent=1 // pred_fallthru
      _
    // Predicated region
    $region14: #{tpu_custom_call.1} parent=1 // pred_check
      _
    $region15: #{tpu_custom_call.1} parent=1 // pred_check_branch
      %50 = sbr.rel (0) target = $region17
    $region16: #{tpu_custom_call.1} parent=1 // pred_region
      %51 = dma.done [#allocation4], 256
    $region17: #{tpu_custom_call.1} parent=1 // pred_fallthru
      _
    %52 = vsyncpa [#allocation3], 1
    %53 = vsyncpa [#allocation4], 1

</llo_original>
